<compile_context>
chip_gen: v6e
topology: v6e:2x2x1
jax: 0.10.0
libtpu: 0.0.40
codegen_flags: <defaults>
</compile_context>

<pallas_src>
import jax
import jax.numpy as jnp
import numpy as np
from jax.experimental import pallas as pl
from jax.experimental.pallas import tpu as pltpu


# --------------------------------------------------------------------------
# Kernel
# --------------------------------------------------------------------------
def attention_kernel(x_ref, w_ref, o_ref):
    # x_ref: (TB, S, H) batch tile of the (batch-major) encoder output, VMEM
    # w_ref: (1, 1, H)  Linear weight (out_features = 1), f32, VMEM (resident)
    # o_ref: (TB, S)    softmax over S for this batch tile (S on lanes)
    x = x_ref[...]                                   # (TB, S, H)
    w = w_ref[...]                                   # (1, 1, H), f32

    # Linear(H, 1): scores[b, s] = sum_h x[b, s, h] * w[h]
    # (bias omitted: softmax over S is shift-invariant).
    scores = jnp.sum(x.astype(jnp.float32) * w, axis=-1)        # (TB, S) f32

    # Numerically stable softmax over the sequence axis (last axis here).
    m = jnp.max(scores, axis=-1, keepdims=True)                 # (TB, 1)
    e = jnp.exp(scores - m)                                     # (TB, S)
    denom = jnp.sum(e, axis=-1, keepdims=True)                  # (TB, 1)
    probs = e * pl.reciprocal(denom, approx=True)               # EUP reciprocal
    o_ref[...] = probs.astype(o_ref.dtype)


# --------------------------------------------------------------------------
# Wrapper
# --------------------------------------------------------------------------
def _vmem_capacity_bytes():
    """Per-core VMEM capacity; conservative fallback (v7x = 64 MiB)."""
    try:
        return int(pltpu.get_tpu_info().vmem_capacity_bytes)
    except Exception:
        return 64 * 1024 * 1024


def _pick_block_batch(B, S, H, in_itemsize, vmem_block_budget):
    """Largest batch tile whose double-buffered input slab fits the budget.

    Returned tile is either B (full) or a multiple of 8 so the (TB, S) output
    block satisfies the (8, 128) tiling constraint on its trailing dims.
    """
    s_pad = ((S + 7) // 8) * 8
    h_pad = ((H + 127) // 128) * 128
    bytes_per_b = 2 * s_pad * h_pad * in_itemsize       # x2 for double buffering
    tb = max(1, vmem_block_budget // bytes_per_b)
    if tb >= B:
        return B
    tb = max(8, (tb // 8) * 8)
    return min(tb, B)


def attention_forward(encoder_output, weight, bias=None, *, block_batch=None):
    """encoder_output: (S, B, H); weight: (1, H); bias: (1,) (unused — softmax
    over dim 0 is invariant to the scalar shift). Returns (S, B)."""
    S, B, H = encoder_output.shape
    del bias  # mathematical no-op through the dim-0 softmax

    # Batch-major layout: trailing (sublane, lane) dims become (S, H) — dense
    # sublanes for any batch size, lane-dense when H % 128 == 0.
    x_bsh = jnp.transpose(encoder_output, (1, 0, 2))             # (B, S, H)
    w3 = weight.reshape(1, 1, H).astype(jnp.float32)             # (1, 1, H)

    vmem_cap = _vmem_capacity_bytes()
    block_budget = vmem_cap // 4          # headroom for output bufs + scratch
    vmem_limit = min(int(vmem_cap * 3) // 4, 128 * 1024 * 1024)

    if block_batch is None:
        tb = _pick_block_batch(B, S, H, encoder_output.dtype.itemsize,
                               block_budget)
    else:
        tb = min(max(1, int(block_batch)), B)
        if tb != B and tb % 8 != 0:
            tb = min(max(8, (tb // 8) * 8), B)

    grid = (pl.cdiv(B, tb),)

    out_bs = pl.pallas_call(
        attention_kernel,
        out_shape=jax.ShapeDtypeStruct((B, S), encoder_output.dtype),
        grid=grid,
        in_specs=[
            pl.BlockSpec((tb, S, H), lambda i: (i, 0, 0)),   # batch tile of x
            pl.BlockSpec((1, 1, H), lambda i: (0, 0, 0)),    # weight, resident
        ],
        out_specs=pl.BlockSpec((tb, S), lambda i: (i, 0)),   # lane-dense (TB,S)
        compiler_params=pltpu.CompilerParams(
            dimension_semantics=("parallel",),               # megacore on v7x
            vmem_limit_bytes=vmem_limit,
        ),
    )(x_bsh, w3)

    return out_bs.T                                          # back to (S, B)


# --------------------------------------------------------------------------
# Pure-JAX reference (includes the bias, proving the shift-invariance claim)
# --------------------------------------------------------------------------
def attention_reference(encoder_output, weight, bias):
    scores = jnp.einsum("sbh,oh->sbo", encoder_output, weight) + bias   # (S,B,1)
    return jax.nn.softmax(scores, axis=0)[..., 0]                       # (S,B)


if __name__ == "__main__":
    S, B, H = 8, 16, 128   # seq_len, batch, hidden_dim (H lane-aligned)

    key = jax.random.PRNGKey(0)
    k_x, k_w, k_b = jax.random.split(key, 3)

    encoder_output = jax.random.normal(k_x, (S, B, H), dtype=jnp.float32)

    # Deterministic Linear(hidden_dim, 1) params (PyTorch-style uniform init).
    bound = 1.0 / np.sqrt(H)
    weight = jax.random.uniform(k_w, (1, H), minval=-bound, maxval=bound,
                                dtype=jnp.float32)
    bias = jax.random.uniform(k_b, (1,), minval=-bound, maxval=bound,
                              dtype=jnp.float32)

    ref = attention_reference(encoder_output, weight, bias)

    # Auto-sized batch tile (whole batch fits -> single block).
    out_auto = jax.block_until_ready(attention_forward(encoder_output, weight, bias))
    np.testing.assert_allclose(np.asarray(out_auto), np.asarray(ref),
                               rtol=1e-3, atol=1e-3)

    # Explicit smaller tile -> multi-step pipelined grid (exercises index_map).
    out_tiled = jax.block_until_ready(
        attention_forward(encoder_output, weight, bias, block_batch=8))
    np.testing.assert_allclose(np.asarray(out_tiled), np.asarray(ref),
                               rtol=1e-3, atol=1e-3)

    print("KERNEL_OK")
</pallas_src>

<mosaic_0001>
module attributes {stable_mosaic.version = 11 : i64} {
  func.func @attention_kernel(%arg0: i32, %arg1: memref<16x8x128xf32, #tpu.memory_space<vmem>>, %arg2: memref<1x1x128xf32, #tpu.memory_space<vmem>>, %arg3: memref<16x8xf32, #tpu.memory_space<vmem>>) attributes {dimension_semantics = [#tpu.dimension_semantics<parallel>], iteration_bounds = array<i64: 1>, scalar_prefetch = 0 : i64, scratch_operands = 0 : i64, tpu.core_type = #tpu.core_type<tc>, window_params = [{transform_indices = @transform_0, window_bounds = array<i64: 16, 8, 128>}, {pipeline_mode = #tpu.pipeline_mode<synchronous>, transform_indices = @transform_1, window_bounds = array<i64: 1, 1, 128>}, {transform_indices = @transform_2, window_bounds = array<i64: 16, 8>}]} {
    %c0 = arith.constant 0 : index
    %c0_0 = arith.constant 0 : index
    %c0_1 = arith.constant 0 : index
    %0 = vector.load %arg1[%c0, %c0_0, %c0_1] : memref<16x8x128xf32, #tpu.memory_space<vmem>>, vector<16x8x128xf32>
    %c0_2 = arith.constant 0 : index
    %c0_3 = arith.constant 0 : index
    %c0_4 = arith.constant 0 : index
    %1 = vector.load %arg2[%c0_2, %c0_3, %c0_4] : memref<1x1x128xf32, #tpu.memory_space<vmem>>, vector<1x1x128xf32>
    %2 = vector.broadcast %1 : vector<1x1x128xf32> to vector<16x8x128xf32>
    %3 = arith.mulf %0, %2 : vector<16x8x128xf32>
    %cst = arith.constant dense<0.000000e+00> : vector<16x8xf32>
    %4 = vector.multi_reduction <add>, %3, %cst [2] : vector<16x8x128xf32> to vector<16x8xf32>
    %cst_5 = arith.constant dense<0xFF800000> : vector<16xf32>
    %5 = vector.multi_reduction <maximumf>, %4, %cst_5 [1] : vector<16x8xf32> to vector<16xf32>
    %6 = vector.shape_cast %5 : vector<16xf32> to vector<16x1xf32>
    %7 = vector.broadcast %6 : vector<16x1xf32> to vector<16x8xf32>
    %8 = arith.subf %4, %7 : vector<16x8xf32>
    %9 = math.exp %8 : vector<16x8xf32>
    %cst_6 = arith.constant dense<0.000000e+00> : vector<16xf32>
    %10 = vector.multi_reduction <add>, %9, %cst_6 [1] : vector<16x8xf32> to vector<16xf32>
    %11 = vector.shape_cast %10 : vector<16xf32> to vector<16x1xf32>
    %12 = tpu.reciprocal %11 {approx = true} : vector<16x1xf32> -> vector<16x1xf32>
    %13 = vector.broadcast %12 : vector<16x1xf32> to vector<16x8xf32>
    %14 = arith.mulf %9, %13 : vector<16x8xf32>
    %c0_7 = arith.constant 0 : index
    %c0_8 = arith.constant 0 : index
    %15 = vector.load %arg3[%c0_7, %c0_8] : memref<16x8xf32, #tpu.memory_space<vmem>>, vector<16x8xf32>
    tpu.vector_store %arg3[%c0_7, %c0_8], %14 {strides = array<i32>} : memref<16x8xf32, #tpu.memory_space<vmem>>, vector<16x8xf32>,
    return
  }
  func.func @transform_0(%arg0: i32) -> (i32, i32, i32) {
    %c0_i32 = arith.constant 0 : i32
    %c0_i32_0 = arith.constant 0 : i32
    %c0_i32_1 = arith.constant 0 : i32
    return %arg0, %c0_i32, %c0_i32_0 : i32, i32, i32
  }
  func.func @transform_1(%arg0: i32) -> (i32, i32, i32) {
    %c0_i32 = arith.constant 0 : i32
    %c0_i32_0 = arith.constant 0 : i32
    %c0_i32_1 = arith.constant 0 : i32
    %c0_i32_2 = arith.constant 0 : i32
    return %c0_i32, %c0_i32_0, %c0_i32_1 : i32, i32, i32
  }
  func.func @transform_2(%arg0: i32) -> (i32, i32) {
    %c0_i32 = arith.constant 0 : i32
    %c0_i32_0 = arith.constant 0 : i32
    return %arg0, %c0_i32 : i32, i32
  }
}

</mosaic_0001>

<llo_original>
// kernel: tpu_custom_call.1
$region0: #{tpu_custom_call.1}
  #allocation0 [shape = 'u32[]', space=smem, size = 0x4, offset = 0x4, fixed_abs, tag = 'smem constant byte address 0x4 - core index']
  #allocation1 [shape = 'u32[144,128]{1,0:T(1,128)}', space=vmem, size = 0x12000, scoped, tag = 'internal scratch']
  %s0 = inlined_call_operand.hbm [shape: f32[16,8,128], index: 0, kind: input, shape index: {}]
  %s1 = inlined_call_operand.vmem [shape: f32[1,1,128], index: 1, kind: input, shape index: {}]
  %s2 = inlined_call_operand.vmem [shape: f32[16,8], index: 2, kind: output, shape index: {}]
  %s3 = sld [smem:[#allocation0]]
  $region22: #{tpu_custom_call.1} parent=0
    _
  %s5 = ssub.s32 1, %s3
  %s6 = scalar_select 0, %s5, %s3
  $region1: #{tpu_custom_call.1} parent=0
    #allocation2 [shape = 'u8[65536]{0}', space=vmem, size = 0x10000, scoped, tag = 'input window, operand 0, single buffered']
    #allocation3 [shape = 's32[1]{0}', space=sflag, size = 0x4, scoped, tag = 'scoped memory for tpu_custom_call.1']
    %7 = vsyncpa [#allocation3], 0
    // Predicated region
    $region2: #{tpu_custom_call.1} parent=1 // pred_check
      _
    $region3: #{tpu_custom_call.1} parent=1 // pred_check_branch
      %9 = sbr.rel (0) target = $region5
    $region4: #{tpu_custom_call.1} parent=1 // pred_region
      %s11 = ssub.s32 2048, 2048
      %12 = vsyncadd [#allocation3], %s11
      %s13 = sshll.u32 [#allocation2], 4
      %s14 = int_to_ptr.vmem [resolvable:$true] %s13
      %19 = dma.hbm_to_vmem [thread:$0]  %s0, 2048, %s14, [#allocation3], 128, 128, 8
    $region5: #{tpu_custom_call.1} parent=1 // pred_fallthru
      _
    // Predicated region
    $region6: #{tpu_custom_call.1} parent=1 // pred_check
      _
    $region7: #{tpu_custom_call.1} parent=1 // pred_check_branch
      %21 = sbr.rel (0) target = $region9
    $region8: #{tpu_custom_call.1} parent=1 // pred_region
      _
    $region9: #{tpu_custom_call.1} parent=1 // pred_fallthru
      _
    // Predicated region
    $region10: #{tpu_custom_call.1} parent=1 // pred_check
      _
    $region11: #{tpu_custom_call.1} parent=1 // pred_check_branch
      %23 = sbr.rel (0) target = $region13
    $region12: #{tpu_custom_call.1} parent=1 // pred_region
      %24 = dma.done [#allocation3], 2048
    $region13: #{tpu_custom_call.1} parent=1 // pred_fallthru
      _
    %v25 = vld [vmem:[#allocation2] sm:$0xff]
    %v26 = vld [vmem:[#allocation2 + $0x8] sm:$0xff]
    %v27 = vld [vmem:[#allocation2 + $0x10] sm:$0xff]
    %v28 = vld [vmem:[#allocation2 + $0x18] sm:$0xff]
    %v29 = vld [vmem:[#allocation2 + $0x20] sm:$0xff]
    %v30 = vld [vmem:[#allocation2 + $0x28] sm:$0xff]
    %v31 = vld [vmem:[#allocation2 + $0x30] sm:$0xff]
    %v32 = vld [vmem:[#allocation2 + $0x38] sm:$0xff]
    %v33 = vld [vmem:[#allocation2 + $0x40] sm:$0xff]
    %v34 = vld [vmem:[#allocation2 + $0x48] sm:$0xff]
    %v35 = vld [vmem:[#allocation2 + $0x50] sm:$0xff]
    %v36 = vld [vmem:[#allocation2 + $0x58] sm:$0xff]
    %v37 = vld [vmem:[#allocation2 + $0x60] sm:$0xff]
    %v38 = vld [vmem:[#allocation2 + $0x68] sm:$0xff]
    %v39 = vld [vmem:[#allocation2 + $0x70] sm:$0xff]
    %v40 = vld [vmem:[#allocation2 + $0x78] sm:$0xff]
    %v41 = vld [vmem:[%s1] sm:$0x1]
    %v43 = vlaneseq
    %v44 = vshrl.u32 %v43, 7
    %v45 = vsub.s32 0, %v44
    %v46 = vrot.slane %v41, %v45
    %v48 = vmul.f32 %v25, %v46
    %v49 = vmul.f32 %v26, %v46
    %v50 = vmul.f32 %v27, %v46
    %v51 = vmul.f32 %v28, %v46
    %v52 = vmul.f32 %v29, %v46
    %v53 = vmul.f32 %v30, %v46
    %v54 = vmul.f32 %v31, %v46
    %v55 = vmul.f32 %v32, %v46
    %v56 = vmul.f32 %v33, %v46
    %v57 = vmul.f32 %v34, %v46
    %v58 = vmul.f32 %v35, %v46
    %v59 = vmul.f32 %v36, %v46
    %v60 = vmul.f32 %v37, %v46
    %v61 = vmul.f32 %v38, %v46
    %v62 = vmul.f32 %v39, %v46
    %v63 = vmul.f32 %v40, %v46
    %64 = vadd.xlane.f32.xlu0 %v48
    %v65 = vpop.xlane.xlu0 %64
    %66 = vadd.xlane.f32.xlu0 %v49
    %v67 = vpop.xlane.xlu0 %66
    %68 = vadd.xlane.f32.xlu0 %v50
    %v69 = vpop.xlane.xlu0 %68
    %70 = vadd.xlane.f32.xlu0 %v51
    %v71 = vpop.xlane.xlu0 %70
    %72 = vadd.xlane.f32.xlu0 %v52
    %v73 = vpop.xlane.xlu0 %72
    %74 = vadd.xlane.f32.xlu0 %v53
    %v75 = vpop.xlane.xlu0 %74
    %76 = vadd.xlane.f32.xlu0 %v54
    %v77 = vpop.xlane.xlu0 %76
    %78 = vadd.xlane.f32.xlu0 %v55
    %v79 = vpop.xlane.xlu0 %78
    %80 = vadd.xlane.f32.xlu0 %v56
    %v81 = vpop.xlane.xlu0 %80
    %82 = vadd.xlane.f32.xlu0 %v57
    %v83 = vpop.xlane.xlu0 %82
    %84 = vadd.xlane.f32.xlu0 %v58
    %v85 = vpop.xlane.xlu0 %84
    %86 = vadd.xlane.f32.xlu0 %v59
    %v87 = vpop.xlane.xlu0 %86
    %88 = vadd.xlane.f32.xlu0 %v60
    %v89 = vpop.xlane.xlu0 %88
    %90 = vadd.xlane.f32.xlu0 %v61
    %v91 = vpop.xlane.xlu0 %90
    %92 = vadd.xlane.f32.xlu0 %v62
    %v93 = vpop.xlane.xlu0 %92
    %94 = vadd.xlane.f32.xlu0 %v63
    %v95 = vpop.xlane.xlu0 %94
    %v112 = vlaneseq
    %v113 = vand.u32 %v112, 127
    %v114 = vlaneseq
    %v115 = vshrl.u32 %v114, 7
    %v116 = vsub.s32 %v113, %v115
    %v117 = vrot.slane %v65, %v116
    %v118 = vlaneseq
    %v119 = vshrl.u32 %v118, 7
    %v120 = vsub.s32 %v113, %v119
    %v121 = vrot.slane %v67, %v120
    %v122 = vlaneseq
    %v123 = vshrl.u32 %v122, 7
    %v124 = vsub.s32 %v113, %v123
    %v125 = vrot.slane %v69, %v124
    %v126 = vlaneseq
    %v127 = vshrl.u32 %v126, 7
    %v128 = vsub.s32 %v113, %v127
    %v129 = vrot.slane %v71, %v128
    %v130 = vlaneseq
    %v131 = vshrl.u32 %v130, 7
    %v132 = vsub.s32 %v113, %v131
    %v133 = vrot.slane %v73, %v132
    %v134 = vlaneseq
    %v135 = vshrl.u32 %v134, 7
    %v136 = vsub.s32 %v113, %v135
    %v137 = vrot.slane %v75, %v136
    %v138 = vlaneseq
    %v139 = vshrl.u32 %v138, 7
    %v140 = vsub.s32 %v113, %v139
    %v141 = vrot.slane %v77, %v140
    %v142 = vlaneseq
    %v143 = vshrl.u32 %v142, 7
    %v144 = vsub.s32 %v113, %v143
    %v145 = vrot.slane %v79, %v144
    %v146 = vlaneseq
    %v147 = vshrl.u32 %v146, 7
    %v148 = vsub.s32 %v113, %v147
    %v149 = vrot.slane %v81, %v148
    %v150 = vlaneseq
    %v151 = vshrl.u32 %v150, 7
    %v152 = vsub.s32 %v113, %v151
    %v153 = vrot.slane %v83, %v152
    %v154 = vlaneseq
    %v155 = vshrl.u32 %v154, 7
    %v156 = vsub.s32 %v113, %v155
    %v157 = vrot.slane %v85, %v156
    %v158 = vlaneseq
    %v159 = vshrl.u32 %v158, 7
    %v160 = vsub.s32 %v113, %v159
    %v161 = vrot.slane %v87, %v160
    %v162 = vlaneseq
    %v163 = vshrl.u32 %v162, 7
    %v164 = vsub.s32 %v113, %v163
    %v165 = vrot.slane %v89, %v164
    %v166 = vlaneseq
    %v167 = vshrl.u32 %v166, 7
    %v168 = vsub.s32 %v113, %v167
    %v169 = vrot.slane %v91, %v168
    %v170 = vlaneseq
    %v171 = vshrl.u32 %v170, 7
    %v172 = vsub.s32 %v113, %v171
    %v173 = vrot.slane %v93, %v172
    %v174 = vlaneseq
    %v175 = vshrl.u32 %v174, 7
    %v176 = vsub.s32 %v113, %v175
    %v177 = vrot.slane %v95, %v176
    %vm178 = vcmask 1041409
    %v179 = vsel %vm178, %v121, %v117
    %vm180 = vcmask 1042434
    %v181 = vsel %vm180, %v125, %v179
    %vm182 = vcmask 1043459
    %v183 = vsel %vm182, %v129, %v181
    %vm184 = vcmask 1044484
    %v185 = vsel %vm184, %v133, %v183
    %vm186 = vcmask 1045509
    %v187 = vsel %vm186, %v137, %v185
    %vm188 = vcmask 1046534
    %v189 = vsel %vm188, %v141, %v187
    %vm190 = vcmask 1047559
    %v191 = vsel %vm190, %v145, %v189
    %v192 = vsel %vm178, %v153, %v149
    %v193 = vsel %vm180, %v157, %v192
    %v194 = vsel %vm182, %v161, %v193
    %v195 = vsel %vm184, %v165, %v194
    %v196 = vsel %vm186, %v169, %v195
    %v197 = vsel %vm188, %v173, %v196
    %v198 = vsel %vm190, %v177, %v197
    %vm201 = vcmask 64512
    %v202 = vsel %vm201, %v191, -inf
    %203 = vmax.xlane.f32.xlu0 %v202
    %v204 = vpop.xlane.xlu0 %203
    %v205 = vsel %vm201, %v198, -inf
    %206 = vmax.xlane.f32.xlu0 %v205
    %v207 = vpop.xlane.xlu0 %206
    %v210 = vlaneseq
    %v211 = vshrl.u32 %v210, 7
    %v212 = vsub.s32 0, %v211
    %v213 = vrot.slane %v204, %v212
    %v214 = vlaneseq
    %v215 = vshrl.u32 %v214, 7
    %v216 = vsub.s32 1, %v215
    %v217 = vrot.slane %v204, %v216
    %v218 = vlaneseq
    %v219 = vshrl.u32 %v218, 7
    %v220 = vsub.s32 2, %v219
    %v221 = vrot.slane %v204, %v220
    %v222 = vlaneseq
    %v223 = vshrl.u32 %v222, 7
    %v224 = vsub.s32 3, %v223
    %v225 = vrot.slane %v204, %v224
    %v226 = vlaneseq
    %v227 = vshrl.u32 %v226, 7
    %v228 = vsub.s32 4, %v227
    %v229 = vrot.slane %v204, %v228
    %v230 = vlaneseq
    %v231 = vshrl.u32 %v230, 7
    %v232 = vsub.s32 5, %v231
    %v233 = vrot.slane %v204, %v232
    %v234 = vlaneseq
    %v235 = vshrl.u32 %v234, 7
    %v236 = vsub.s32 6, %v235
    %v237 = vrot.slane %v204, %v236
    %v238 = vlaneseq
    %v239 = vshrl.u32 %v238, 7
    %v240 = vsub.s32 7, %v239
    %v241 = vrot.slane %v204, %v240
    %v242 = vlaneseq
    %v243 = vshrl.u32 %v242, 7
    %v244 = vsub.s32 0, %v243
    %v245 = vrot.slane %v207, %v244
    %v246 = vlaneseq
    %v247 = vshrl.u32 %v246, 7
    %v248 = vsub.s32 1, %v247
    %v249 = vrot.slane %v207, %v248
    %v250 = vlaneseq
    %v251 = vshrl.u32 %v250, 7
    %v252 = vsub.s32 2, %v251
    %v253 = vrot.slane %v207, %v252
    %v254 = vlaneseq
    %v255 = vshrl.u32 %v254, 7
    %v256 = vsub.s32 3, %v255
    %v257 = vrot.slane %v207, %v256
    %v258 = vlaneseq
    %v259 = vshrl.u32 %v258, 7
    %v260 = vsub.s32 4, %v259
    %v261 = vrot.slane %v207, %v260
    %v262 = vlaneseq
    %v263 = vshrl.u32 %v262, 7
    %v264 = vsub.s32 5, %v263
    %v265 = vrot.slane %v207, %v264
    %v266 = vlaneseq
    %v267 = vshrl.u32 %v266, 7
    %v268 = vsub.s32 6, %v267
    %v269 = vrot.slane %v207, %v268
    %v270 = vlaneseq
    %v271 = vshrl.u32 %v270, 7
    %v272 = vsub.s32 7, %v271
    %v273 = vrot.slane %v207, %v272
    %v290 = vsub.f32 %v65, %v213
    %v291 = vsub.f32 %v67, %v217
    %v292 = vsub.f32 %v69, %v221
    %v293 = vsub.f32 %v71, %v225
    %v294 = vsub.f32 %v73, %v229
    %v295 = vsub.f32 %v75, %v233
    %v296 = vsub.f32 %v77, %v237
    %v297 = vsub.f32 %v79, %v241
    %v298 = vsub.f32 %v81, %v245
    %v299 = vsub.f32 %v83, %v249
    %v300 = vsub.f32 %v85, %v253
    %v301 = vsub.f32 %v87, %v257
    %v302 = vsub.f32 %v89, %v261
    %v303 = vsub.f32 %v91, %v265
    %v304 = vsub.f32 %v93, %v269
    %v305 = vsub.f32 %v95, %v273
    %v306 = vmul.f32 %v290, 1.442695
    %v307 = vpow.pop %v306
    %v308 = vmul.f32 %v291, 1.442695
    %v309 = vpow.pop %v308
    %v310 = vmul.f32 %v292, 1.442695
    %v311 = vpow.pop %v310
    %v312 = vmul.f32 %v293, 1.442695
    %v313 = vpow.pop %v312
    %v314 = vmul.f32 %v294, 1.442695
    %v315 = vpow.pop %v314
    %v316 = vmul.f32 %v295, 1.442695
    %v317 = vpow.pop %v316
    %v318 = vmul.f32 %v296, 1.442695
    %v319 = vpow.pop %v318
    %v320 = vmul.f32 %v297, 1.442695
    %v321 = vpow.pop %v320
    %v322 = vmul.f32 %v298, 1.442695
    %v323 = vpow.pop %v322
    %v324 = vmul.f32 %v299, 1.442695
    %v325 = vpow.pop %v324
    %v326 = vmul.f32 %v300, 1.442695
    %v327 = vpow.pop %v326
    %v328 = vmul.f32 %v301, 1.442695
    %v329 = vpow.pop %v328
    %v330 = vmul.f32 %v302, 1.442695
    %v331 = vpow.pop %v330
    %v332 = vmul.f32 %v303, 1.442695
    %v333 = vpow.pop %v332
    %v334 = vmul.f32 %v304, 1.442695
    %v335 = vpow.pop %v334
    %v336 = vmul.f32 %v305, 1.442695
    %v337 = vpow.pop %v336
    %354 = vset.pattern.permute.xlu0 0
    %355 = vperm.xlu0 %354, %v307
    %v356 = vpop.permute.xlu0 %355
    %357 = vset.pattern.permute.xlu0 0
    %358 = vperm.xlu0 %357, %v309
    %v359 = vpop.permute.xlu0 %358
    %360 = vset.pattern.permute.xlu0 0
    %361 = vperm.xlu0 %360, %v311
    %v362 = vpop.permute.xlu0 %361
    %363 = vset.pattern.permute.xlu0 0
    %364 = vperm.xlu0 %363, %v313
    %v365 = vpop.permute.xlu0 %364
    %366 = vset.pattern.permute.xlu0 0
    %367 = vperm.xlu0 %366, %v315
    %v368 = vpop.permute.xlu0 %367
    %369 = vset.pattern.permute.xlu0 0
    %370 = vperm.xlu0 %369, %v317
    %v371 = vpop.permute.xlu0 %370
    %372 = vset.pattern.permute.xlu0 0
    %373 = vperm.xlu0 %372, %v319
    %v374 = vpop.permute.xlu0 %373
    %375 = vset.pattern.permute.xlu0 0
    %376 = vperm.xlu0 %375, %v321
    %v377 = vpop.permute.xlu0 %376
    %378 = vset.pattern.permute.xlu0 0
    %379 = vperm.xlu0 %378, %v323
    %v380 = vpop.permute.xlu0 %379
    %381 = vset.pattern.permute.xlu0 0
    %382 = vperm.xlu0 %381, %v325
    %v383 = vpop.permute.xlu0 %382
    %384 = vset.pattern.permute.xlu0 0
    %385 = vperm.xlu0 %384, %v327
    %v386 = vpop.permute.xlu0 %385
    %387 = vset.pattern.permute.xlu0 0
    %388 = vperm.xlu0 %387, %v329
    %v389 = vpop.permute.xlu0 %388
    %390 = vset.pattern.permute.xlu0 0
    %391 = vperm.xlu0 %390, %v331
    %v392 = vpop.permute.xlu0 %391
    %393 = vset.pattern.permute.xlu0 0
    %394 = vperm.xlu0 %393, %v333
    %v395 = vpop.permute.xlu0 %394
    %396 = vset.pattern.permute.xlu0 0
    %397 = vperm.xlu0 %396, %v335
    %v398 = vpop.permute.xlu0 %397
    %399 = vset.pattern.permute.xlu0 0
    %400 = vperm.xlu0 %399, %v337
    %v401 = vpop.permute.xlu0 %400
    %v402 = vlaneseq
    %v403 = vshrl.u32 %v402, 7
    %v404 = vsub.s32 %v113, %v403
    %v405 = vrot.slane %v356, %v404
    %v406 = vlaneseq
    %v407 = vshrl.u32 %v406, 7
    %v408 = vsub.s32 %v113, %v407
    %v409 = vrot.slane %v359, %v408
    %v410 = vlaneseq
    %v411 = vshrl.u32 %v410, 7
    %v412 = vsub.s32 %v113, %v411
    %v413 = vrot.slane %v362, %v412
    %v414 = vlaneseq
    %v415 = vshrl.u32 %v414, 7
    %v416 = vsub.s32 %v113, %v415
    %v417 = vrot.slane %v365, %v416
    %v418 = vlaneseq
    %v419 = vshrl.u32 %v418, 7
    %v420 = vsub.s32 %v113, %v419
    %v421 = vrot.slane %v368, %v420
    %v422 = vlaneseq
    %v423 = vshrl.u32 %v422, 7
    %v424 = vsub.s32 %v113, %v423
    %v425 = vrot.slane %v371, %v424
    %v426 = vlaneseq
    %v427 = vshrl.u32 %v426, 7
    %v428 = vsub.s32 %v113, %v427
    %v429 = vrot.slane %v374, %v428
    %v430 = vlaneseq
    %v431 = vshrl.u32 %v430, 7
    %v432 = vsub.s32 %v113, %v431
    %v433 = vrot.slane %v377, %v432
    %v434 = vlaneseq
    %v435 = vshrl.u32 %v434, 7
    %v436 = vsub.s32 %v113, %v435
    %v437 = vrot.slane %v380, %v436
    %v438 = vlaneseq
    %v439 = vshrl.u32 %v438, 7
    %v440 = vsub.s32 %v113, %v439
    %v441 = vrot.slane %v383, %v440
    %v442 = vlaneseq
    %v443 = vshrl.u32 %v442, 7
    %v444 = vsub.s32 %v113, %v443
    %v445 = vrot.slane %v386, %v444
    %v446 = vlaneseq
    %v447 = vshrl.u32 %v446, 7
    %v448 = vsub.s32 %v113, %v447
    %v449 = vrot.slane %v389, %v448
    %v450 = vlaneseq
    %v451 = vshrl.u32 %v450, 7
    %v452 = vsub.s32 %v113, %v451
    %v453 = vrot.slane %v392, %v452
    %v454 = vlaneseq
    %v455 = vshrl.u32 %v454, 7
    %v456 = vsub.s32 %v113, %v455
    %v457 = vrot.slane %v395, %v456
    %v458 = vlaneseq
    %v459 = vshrl.u32 %v458, 7
    %v460 = vsub.s32 %v113, %v459
    %v461 = vrot.slane %v398, %v460
    %v462 = vlaneseq
    %v463 = vshrl.u32 %v462, 7
    %v464 = vsub.s32 %v113, %v463
    %v465 = vrot.slane %v401, %v464
    %v466 = vsel %vm178, %v409, %v405
    %v467 = vsel %vm180, %v413, %v466
    %v468 = vsel %vm182, %v417, %v467
    %v469 = vsel %vm184, %v421, %v468
    %v470 = vsel %vm186, %v425, %v469
    %v471 = vsel %vm188, %v429, %v470
    %v472 = vsel %vm190, %v433, %v471
    %v473 = vsel %vm178, %v441, %v437
    %v474 = vsel %vm180, %v445, %v473
    %v475 = vsel %vm182, %v449, %v474
    %v476 = vsel %vm184, %v453, %v475
    %v477 = vsel %vm186, %v457, %v476
    %v478 = vsel %vm188, %v461, %v477
    %v479 = vsel %vm190, %v465, %v478
    %v482 = vsel %vm201, %v472, 0.0
    %483 = vadd.xlane.f32.xlu0 %v482
    %v484 = vpop.xlane.xlu0 %483
    %v485 = vsel %vm201, %v479, 0.0
    %486 = vadd.xlane.f32.xlu0 %v485
    %v487 = vpop.xlane.xlu0 %486
    %v488 = vrcp.pop %v484
    %v489 = vrcp.pop %v487
    %v492 = vlaneseq
    %v493 = vshrl.u32 %v492, 7
    %v494 = vsub.s32 0, %v493
    %v495 = vrot.slane %v488, %v494
    %v496 = vlaneseq
    %v497 = vshrl.u32 %v496, 7
    %v498 = vsub.s32 1, %v497
    %v499 = vrot.slane %v488, %v498
    %v500 = vlaneseq
    %v501 = vshrl.u32 %v500, 7
    %v502 = vsub.s32 2, %v501
    %v503 = vrot.slane %v488, %v502
    %v504 = vlaneseq
    %v505 = vshrl.u32 %v504, 7
    %v506 = vsub.s32 3, %v505
    %v507 = vrot.slane %v488, %v506
    %v508 = vlaneseq
    %v509 = vshrl.u32 %v508, 7
    %v510 = vsub.s32 4, %v509
    %v511 = vrot.slane %v488, %v510
    %v512 = vlaneseq
    %v513 = vshrl.u32 %v512, 7
    %v514 = vsub.s32 5, %v513
    %v515 = vrot.slane %v488, %v514
    %v516 = vlaneseq
    %v517 = vshrl.u32 %v516, 7
    %v518 = vsub.s32 6, %v517
    %v519 = vrot.slane %v488, %v518
    %v520 = vlaneseq
    %v521 = vshrl.u32 %v520, 7
    %v522 = vsub.s32 7, %v521
    %v523 = vrot.slane %v488, %v522
    %v524 = vlaneseq
    %v525 = vshrl.u32 %v524, 7
    %v526 = vsub.s32 0, %v525
    %v527 = vrot.slane %v489, %v526
    %v528 = vlaneseq
    %v529 = vshrl.u32 %v528, 7
    %v530 = vsub.s32 1, %v529
    %v531 = vrot.slane %v489, %v530
    %v532 = vlaneseq
    %v533 = vshrl.u32 %v532, 7
    %v534 = vsub.s32 2, %v533
    %v535 = vrot.slane %v489, %v534
    %v536 = vlaneseq
    %v537 = vshrl.u32 %v536, 7
    %v538 = vsub.s32 3, %v537
    %v539 = vrot.slane %v489, %v538
    %v540 = vlaneseq
    %v541 = vshrl.u32 %v540, 7
    %v542 = vsub.s32 4, %v541
    %v543 = vrot.slane %v489, %v542
    %v544 = vlaneseq
    %v545 = vshrl.u32 %v544, 7
    %v546 = vsub.s32 5, %v545
    %v547 = vrot.slane %v489, %v546
    %v548 = vlaneseq
    %v549 = vshrl.u32 %v548, 7
    %v550 = vsub.s32 6, %v549
    %v551 = vrot.slane %v489, %v550
    %v552 = vlaneseq
    %v553 = vshrl.u32 %v552, 7
    %v554 = vsub.s32 7, %v553
    %v555 = vrot.slane %v489, %v554
    %v572 = vmul.f32 %v307, %v495
    %v573 = vmul.f32 %v309, %v499
    %v574 = vmul.f32 %v311, %v503
    %v575 = vmul.f32 %v313, %v507
    %v576 = vmul.f32 %v315, %v511
    %v577 = vmul.f32 %v317, %v515
    %v578 = vmul.f32 %v319, %v519
    %v579 = vmul.f32 %v321, %v523
    %v580 = vmul.f32 %v323, %v527
    %v581 = vmul.f32 %v325, %v531
    %v582 = vmul.f32 %v327, %v535
    %v583 = vmul.f32 %v329, %v539
    %v584 = vmul.f32 %v331, %v543
    %v585 = vmul.f32 %v333, %v547
    %v586 = vmul.f32 %v335, %v551
    %v587 = vmul.f32 %v337, %v555
    %604 = vset.pattern.permute.xlu0 0
    %605 = vperm.xlu0 %604, %v572
    %v606 = vpop.permute.xlu0 %605
    %607 = vset.pattern.permute.xlu0 0
    %608 = vperm.xlu0 %607, %v573
    %v609 = vpop.permute.xlu0 %608
    %610 = vset.pattern.permute.xlu0 0
    %611 = vperm.xlu0 %610, %v574
    %v612 = vpop.permute.xlu0 %611
    %613 = vset.pattern.permute.xlu0 0
    %614 = vperm.xlu0 %613, %v575
    %v615 = vpop.permute.xlu0 %614
    %616 = vset.pattern.permute.xlu0 0
    %617 = vperm.xlu0 %616, %v576
    %v618 = vpop.permute.xlu0 %617
    %619 = vset.pattern.permute.xlu0 0
    %620 = vperm.xlu0 %619, %v577
    %v621 = vpop.permute.xlu0 %620
    %622 = vset.pattern.permute.xlu0 0
    %623 = vperm.xlu0 %622, %v578
    %v624 = vpop.permute.xlu0 %623
    %625 = vset.pattern.permute.xlu0 0
    %626 = vperm.xlu0 %625, %v579
    %v627 = vpop.permute.xlu0 %626
    %628 = vset.pattern.permute.xlu0 0
    %629 = vperm.xlu0 %628, %v580
    %v630 = vpop.permute.xlu0 %629
    %631 = vset.pattern.permute.xlu0 0
    %632 = vperm.xlu0 %631, %v581
    %v633 = vpop.permute.xlu0 %632
    %634 = vset.pattern.permute.xlu0 0
    %635 = vperm.xlu0 %634, %v582
    %v636 = vpop.permute.xlu0 %635
    %637 = vset.pattern.permute.xlu0 0
    %638 = vperm.xlu0 %637, %v583
    %v639 = vpop.permute.xlu0 %638
    %640 = vset.pattern.permute.xlu0 0
    %641 = vperm.xlu0 %640, %v584
    %v642 = vpop.permute.xlu0 %641
    %643 = vset.pattern.permute.xlu0 0
    %644 = vperm.xlu0 %643, %v585
    %v645 = vpop.permute.xlu0 %644
    %646 = vset.pattern.permute.xlu0 0
    %647 = vperm.xlu0 %646, %v586
    %v648 = vpop.permute.xlu0 %647
    %649 = vset.pattern.permute.xlu0 0
    %650 = vperm.xlu0 %649, %v587
    %v651 = vpop.permute.xlu0 %650
    %v652 = vlaneseq
    %v653 = vshrl.u32 %v652, 7
    %v654 = vsub.s32 %v113, %v653
    %v655 = vrot.slane %v606, %v654
    %v656 = vlaneseq
    %v657 = vshrl.u32 %v656, 7
    %v658 = vsub.s32 %v113, %v657
    %v659 = vrot.slane %v609, %v658
    %v660 = vlaneseq
    %v661 = vshrl.u32 %v660, 7
    %v662 = vsub.s32 %v113, %v661
    %v663 = vrot.slane %v612, %v662
    %v664 = vlaneseq
    %v665 = vshrl.u32 %v664, 7
    %v666 = vsub.s32 %v113, %v665
    %v667 = vrot.slane %v615, %v666
    %v668 = vlaneseq
    %v669 = vshrl.u32 %v668, 7
    %v670 = vsub.s32 %v113, %v669
    %v671 = vrot.slane %v618, %v670
    %v672 = vlaneseq
    %v673 = vshrl.u32 %v672, 7
    %v674 = vsub.s32 %v113, %v673
    %v675 = vrot.slane %v621, %v674
    %v676 = vlaneseq
    %v677 = vshrl.u32 %v676, 7
    %v678 = vsub.s32 %v113, %v677
    %v679 = vrot.slane %v624, %v678
    %v680 = vlaneseq
    %v681 = vshrl.u32 %v680, 7
    %v682 = vsub.s32 %v113, %v681
    %v683 = vrot.slane %v627, %v682
    %v684 = vlaneseq
    %v685 = vshrl.u32 %v684, 7
    %v686 = vsub.s32 %v113, %v685
    %v687 = vrot.slane %v630, %v686
    %v688 = vlaneseq
    %v689 = vshrl.u32 %v688, 7
    %v690 = vsub.s32 %v113, %v689
    %v691 = vrot.slane %v633, %v690
    %v692 = vlaneseq
    %v693 = vshrl.u32 %v692, 7
    %v694 = vsub.s32 %v113, %v693
    %v695 = vrot.slane %v636, %v694
    %v696 = vlaneseq
    %v697 = vshrl.u32 %v696, 7
    %v698 = vsub.s32 %v113, %v697
    %v699 = vrot.slane %v639, %v698
    %v700 = vlaneseq
    %v701 = vshrl.u32 %v700, 7
    %v702 = vsub.s32 %v113, %v701
    %v703 = vrot.slane %v642, %v702
    %v704 = vlaneseq
    %v705 = vshrl.u32 %v704, 7
    %v706 = vsub.s32 %v113, %v705
    %v707 = vrot.slane %v645, %v706
    %v708 = vlaneseq
    %v709 = vshrl.u32 %v708, 7
    %v710 = vsub.s32 %v113, %v709
    %v711 = vrot.slane %v648, %v710
    %v712 = vlaneseq
    %v713 = vshrl.u32 %v712, 7
    %v714 = vsub.s32 %v113, %v713
    %v715 = vrot.slane %v651, %v714
    %v716 = vsel %vm178, %v659, %v655
    %v717 = vsel %vm180, %v663, %v716
    %v718 = vsel %vm182, %v667, %v717
    %v719 = vsel %vm184, %v671, %v718
    %v720 = vsel %vm186, %v675, %v719
    %v721 = vsel %vm188, %v679, %v720
    %v722 = vsel %vm190, %v683, %v721
    %v723 = vsel %vm178, %v691, %v687
    %v724 = vsel %vm180, %v695, %v723
    %v725 = vsel %vm182, %v699, %v724
    %v726 = vsel %vm184, %v703, %v725
    %v727 = vsel %vm186, %v707, %v726
    %v728 = vsel %vm188, %v711, %v727
    %v729 = vsel %vm190, %v715, %v728
    %732 = vst.msk [vmem:[%s2] sm:$0xff] %vm201, %v722
    %733 = vst.msk [vmem:[%s2 + $0x8] sm:$0xff] %vm201, %v729
    // Predicated region
    $region14: #{tpu_custom_call.1} parent=1 // pred_check
      _
    $region15: #{tpu_custom_call.1} parent=1 // pred_check_branch
      %735 = sbr.rel (0) target = $region17
    $region16: #{tpu_custom_call.1} parent=1 // pred_region
      _
    $region17: #{tpu_custom_call.1} parent=1 // pred_fallthru
      _
    // Predicated region
    $region18: #{tpu_custom_call.1} parent=1 // pred_check
      _
    $region19: #{tpu_custom_call.1} parent=1 // pred_check_branch
      %737 = sbr.rel (0) target = $region21
    $region20: #{tpu_custom_call.1} parent=1 // pred_region
      _
    $region21: #{tpu_custom_call.1} parent=1 // pred_fallthru
      _
    %738 = vsyncpa [#allocation3], 1

</llo_original>
